<compile_context>
chip_gen: v7x
topology: tpu7x:2x2x1
jax: 0.10.0
libtpu: 0.0.40
codegen_flags: <defaults>
</compile_context>

<pallas_src>
import functools
import math

import jax
import jax.numpy as jnp
from jax.experimental import pallas as pl
from jax.experimental.pallas import tpu as pltpu

EPS = 1e-5                       # nn.LayerNorm default eps
_VMEM_LIMIT = 48 * 1024 * 1024   # explicit scoped-VMEM budget (v7x-safe w/ headroom)


def _cparams(n_grid_dims):
    return pltpu.CompilerParams(
        dimension_semantics=("parallel",) * n_grid_dims,
        vmem_limit_bytes=_VMEM_LIMIT)


def _row_tile(n, target):
    """Largest row tile <= target that divides n and is a multiple of 8.
    Falls back to the full dimension (always a legal block shape) when no
    such divisor exists."""
    if n <= target:
        return n
    t = min((target // 8) * 8, (n // 8) * 8)
    while t >= 8:
        if n % t == 0:
            return t
        t -= 8
    return n


def _img_row_tile(h, w, target_elems=4096):
    """Largest image-row count whose tile (rows*w) stays near target_elems and
    divides h."""
    t = max(1, min(h, target_elems // max(w, 1)))
    while t > 1 and h % t:
        t -= 1
    return t


def _layernorm(x, g, b):
    mean = jnp.mean(x, axis=-1, keepdims=True)
    var = jnp.mean(jnp.square(x - mean), axis=-1, keepdims=True)
    return (x - mean) * jax.lax.rsqrt(var + EPS) * g + b


# --------------------- kernel 1a: LN1 + Q + fused K/V (sr_ratio == 1) -------

def _ln1_qkv_kernel(x_ref, g_ref, b_ref, qw_ref, qb_ref, kvw_ref, kvb_ref,
                    q_ref, kv_ref):
    x = x_ref[...].astype(jnp.float32)
    ln = _layernorm(x, g_ref[...], b_ref[...])
    q = jnp.dot(ln, qw_ref[...].astype(jnp.float32),
                preferred_element_type=jnp.float32) + qb_ref[...]
    kv = jnp.dot(ln, kvw_ref[...].astype(jnp.float32),
                 preferred_element_type=jnp.float32) + kvb_ref[...]
    q_ref[...] = q.astype(q_ref.dtype)
    kv_ref[...] = kv.astype(kv_ref.dtype)


def ln1_qkv(x2d, g, b, qw, qb, kvw, kvb, *, tile=1024):
    N, C = x2d.shape
    C2 = kvw.shape[1]
    tn = _row_tile(N, tile)
    const = lambda i: (0, 0)
    return pl.pallas_call(
        _ln1_qkv_kernel,
        out_shape=(jax.ShapeDtypeStruct((N, C), x2d.dtype),
                   jax.ShapeDtypeStruct((N, C2), x2d.dtype)),
        grid=(N // tn,),
        in_specs=[pl.BlockSpec((tn, C), lambda i: (i, 0)),
                  pl.BlockSpec((1, C), const),
                  pl.BlockSpec((1, C), const),
                  pl.BlockSpec((C, C), const),
                  pl.BlockSpec((1, C), const),
                  pl.BlockSpec((C, C2), const),
                  pl.BlockSpec((1, C2), const)],
        out_specs=(pl.BlockSpec((tn, C), lambda i: (i, 0)),
                   pl.BlockSpec((tn, C2), lambda i: (i, 0))),
        compiler_params=_cparams(1),
    )(x2d, g.reshape(1, C), b.reshape(1, C), qw, qb.reshape(1, C),
      kvw, kvb.reshape(1, C2))


# --------------------- kernel 1b: LN1 + Q (sr_ratio > 1, ln1 reused) --------

def _ln1_q_kernel(x_ref, g_ref, b_ref, qw_ref, qb_ref, ln_ref, q_ref):
    x = x_ref[...].astype(jnp.float32)
    ln = _layernorm(x, g_ref[...], b_ref[...])
    q = jnp.dot(ln, qw_ref[...].astype(jnp.float32),
                preferred_element_type=jnp.float32) + qb_ref[...]
    ln_ref[...] = ln.astype(ln_ref.dtype)
    q_ref[...] = q.astype(q_ref.dtype)


def ln1_q(x2d, g, b, qw, qb, *, tile=1024):
    N, C = x2d.shape
    tn = _row_tile(N, tile)
    const = lambda i: (0, 0)
    return pl.pallas_call(
        _ln1_q_kernel,
        out_shape=(jax.ShapeDtypeStruct((N, C), x2d.dtype),
                   jax.ShapeDtypeStruct((N, C), x2d.dtype)),
        grid=(N // tn,),
        in_specs=[pl.BlockSpec((tn, C), lambda i: (i, 0)),
                  pl.BlockSpec((1, C), const),
                  pl.BlockSpec((1, C), const),
                  pl.BlockSpec((C, C), const),
                  pl.BlockSpec((1, C), const)],
        out_specs=(pl.BlockSpec((tn, C), lambda i: (i, 0)),
                   pl.BlockSpec((tn, C), lambda i: (i, 0))),
        compiler_params=_cparams(1),
    )(x2d, g.reshape(1, C), b.reshape(1, C), qw, qb.reshape(1, C))


# ---------------- kernel 2: SR patch-matmul + SR LayerNorm + fused K/V ------

def _sr_ln_kv_kernel(x_ref, srw_ref, srb_ref, g_ref, b_ref, kvw_ref, kvb_ref,
                     o_ref):
    x = x_ref[...].astype(jnp.float32)
    red = jnp.dot(x, srw_ref[...].astype(jnp.float32),
                  preferred_element_type=jnp.float32) + srb_ref[...]
    ln = _layernorm(red, g_ref[...], b_ref[...])
    kv = jnp.dot(ln, kvw_ref[...].astype(jnp.float32),
                 preferred_element_type=jnp.float32) + kvb_ref[...]
    o_ref[...] = kv.astype(o_ref.dtype)


def sr_ln_kv(xr2d, sr_w, sr_b, g, b, kv_w, kv_b, *, tile=1024):
    N, K = xr2d.shape
    C = sr_w.shape[1]
    C2 = kv_w.shape[1]
    tn = _row_tile(N, tile)
    const = lambda i: (0, 0)
    return pl.pallas_call(
        _sr_ln_kv_kernel,
        out_shape=jax.ShapeDtypeStruct((N, C2), xr2d.dtype),
        grid=(N // tn,),
        in_specs=[pl.BlockSpec((tn, K), lambda i: (i, 0)),
                  pl.BlockSpec((K, C), const),
                  pl.BlockSpec((1, C), const),
                  pl.BlockSpec((1, C), const),
                  pl.BlockSpec((1, C), const),
                  pl.BlockSpec((C, C2), const),
                  pl.BlockSpec((1, C2), const)],
        out_specs=pl.BlockSpec((tn, C2), lambda i: (i, 0)),
        compiler_params=_cparams(1),
    )(xr2d, sr_w, sr_b.reshape(1, C), g.reshape(1, C), b.reshape(1, C),
      kv_w, kv_b.reshape(1, C2))


# ---------------- kernel 3: attention + O-proj + first residual -------------

def _attn_kernel(q_ref, kv_ref, ow_ref, ob_ref, res_ref, o_ref, *, num_heads):
    C = q_ref.shape[-1]
    D = C // num_heads
    q = q_ref[0].astype(jnp.float32)     # (tq, C); softmax scale pre-folded into q_w/q_b
    kv = kv_ref[0].astype(jnp.float32)   # (Sr, 2C) = K | V, resident across q tiles
    ctxs = []
    for h in range(num_heads):           # heads sliced in-kernel (no wrapper transposes)
        qh = q[:, h * D:(h + 1) * D]
        kh = kv[:, h * D:(h + 1) * D]
        vh = kv[:, C + h * D:C + (h + 1) * D]
        s = jax.lax.dot_general(qh, kh, (((1,), (1,)), ((), ())),
                                preferred_element_type=jnp.float32)   # (tq, Sr)
        s = s - jnp.max(s, axis=-1, keepdims=True)
        p = jnp.exp(s)
        p = p / jnp.sum(p, axis=-1, keepdims=True)   # exact normalization
        ctxs.append(jnp.dot(p, vh, preferred_element_type=jnp.float32))
    ctx = jnp.concatenate(ctxs, axis=-1)             # (tq, C)
    out = jnp.dot(ctx, ow_ref[...].astype(jnp.float32),   # single O-proj after head loop
                  preferred_element_type=jnp.float32) + ob_ref[...]
    o_ref[0] = (out + res_ref[0].astype(jnp.float32)).astype(o_ref.dtype)


def attention_block(q, kv, o_w, o_b, residual, *, num_heads, tile=512):
    B, S, C = q.shape
    Sr, C2 = kv.shape[1], kv.shape[2]
    tq = _row_tile(S, tile)
    const = lambda b, i: (0, 0)
    return pl.pallas_call(
        functools.partial(_attn_kernel, num_heads=num_heads),
        out_shape=jax.ShapeDtypeStruct((B, S, C), q.dtype),
        grid=(B, S // tq),
        in_specs=[pl.BlockSpec((1, tq, C), lambda b, i: (b, i, 0)),
                  pl.BlockSpec((1, Sr, C2), lambda b, i: (b, 0, 0)),
                  pl.BlockSpec((C, C), const),
                  pl.BlockSpec((1, C), const),
                  pl.BlockSpec((1, tq, C), lambda b, i: (b, i, 0))],
        out_specs=pl.BlockSpec((1, tq, C), lambda b, i: (b, i, 0)),
        compiler_params=_cparams(2),
    )(q, kv, o_w, o_b.reshape(1, C), residual)


# -------- kernel 4: LN2 + dense1 + 3x3 DW conv + GELU + dense2 + residual ---

def _mixffn_kernel(x_ref, top_ref, bot_ref, g_ref, b_ref, d1w_ref, d1b_ref,
                   dww_ref, dwb_ref, d2w_ref, d2b_ref, o_ref):
    i = pl.program_id(1)
    n = pl.num_programs(1)
    tm = x_ref.shape[1]            # th * W rows in this tile
    W = top_ref.shape[1]           # image width (halo block = one image row)
    Cm = d1w_ref.shape[1]
    R = tm + 2 * W

    x = x_ref[0].astype(jnp.float32)       # (tm, C)  main rows (also the residual)
    top = top_ref[0].astype(jnp.float32)   # (W, C)   image row above (clamped at border)
    bot = bot_ref[0].astype(jnp.float32)   # (W, C)   image row below (clamped at border)
    xin = jnp.concatenate([top, x, bot], axis=0)        # (R, C)

    # LayerNorm2 + dense1 (the 2 halo rows are recomputed; at image borders the
    # halo rows of h are zeroed AFTER dense1 to match zero-padded h1 exactly).
    ln = _layernorm(xin, g_ref[...], b_ref[...])
    h = jnp.dot(ln, d1w_ref[...].astype(jnp.float32),
                preferred_element_type=jnp.float32) + d1b_ref[...]      # (R, Cm)

    s_idx = jax.lax.broadcasted_iota(jnp.int32, (R, 1), 0)
    pad_rows = ((i == 0) & (s_idx < W)) | ((i == n - 1) & (s_idx >= tm + W))
    h = jnp.where(pad_rows, 0.0, h)

    # 3x3 depthwise conv on the flat (th+2)*W row block: column taps are
    # shifted views + edge masks, row taps are 8-aligned static slices
    # (no padded scratch, no full-buffer zero fill).
    if (W & (W - 1)) == 0:
        col = jnp.bitwise_and(s_idx, W - 1)
    else:
        col = s_idx % W
    # TODO(synk): swap jnp.roll for pltpu.roll (native XLU rotate) once the
    # shift-direction convention is verified on this toolchain.
    left = jnp.where(col == 0, 0.0, jnp.roll(h, 1, axis=0))       # source col x-1
    right = jnp.where(col == W - 1, 0.0, jnp.roll(h, -1, axis=0))  # source col x+1
    taps = (left, h, right)
    w = dww_ref[...].astype(jnp.float32)                  # (3, 3, Cm)
    acc = jnp.zeros((tm, Cm), jnp.float32)
    for dy in range(3):
        for dx in range(3):
            acc = acc + taps[dx][dy * W: dy * W + tm] * w[dy, dx][None, :]
    acc = acc + dwb_ref[...]

    act = jax.nn.gelu(acc, approximate=False)             # exact GELU
    y = jnp.dot(act, d2w_ref[...].astype(jnp.float32),
                preferred_element_type=jnp.float32) + d2b_ref[...]
    o_ref[0] = (y + x).astype(o_ref.dtype)                # + second residual


def mixffn_block(x1, g, b, d1_w, d1_b, dw_w, dw_b, d2_w, d2_b, H, W,
                 *, tile_elems=4096):
    """x1: (B, S=H*W, C) attention output (= residual)."""
    B, S, C = x1.shape
    Cm = d1_w.shape[1]
    # NOTE: assumes W is a multiple of 8 (true for SegFormer stage resolutions)
    # so the (1, th*W, C) / (1, W, C) blocks are sublane-aligned.
    th = _img_row_tile(H, W, tile_elems)
    n = H // th
    tm = th * W

    main_idx = lambda bi, i: (bi, i, 0)
    # Row halo: one image row above / below, clamped at the image border
    # (the kernel zeroes the corresponding h rows at the border).
    top_idx = lambda bi, i: (bi, jnp.maximum(i * th - 1, 0), 0)
    bot_idx = lambda bi, i: (bi, jnp.minimum(i * th + th, H - 1), 0)
    const = lambda bi, i: (0, 0)

    return pl.pallas_call(
        _mixffn_kernel,
        out_shape=jax.ShapeDtypeStruct((B, S, C), x1.dtype),
        grid=(B, n),
        in_specs=[pl.BlockSpec((1, tm, C), main_idx),
                  pl.BlockSpec((1, W, C), top_idx),
                  pl.BlockSpec((1, W, C), bot_idx),
                  pl.BlockSpec((1, C), const),
                  pl.BlockSpec((1, C), const),
                  pl.BlockSpec((C, Cm), const),
                  pl.BlockSpec((1, Cm), const),
                  pl.BlockSpec((3, 3, Cm), lambda bi, i: (0, 0, 0)),
                  pl.BlockSpec((1, Cm), const),
                  pl.BlockSpec((Cm, C), const),
                  pl.BlockSpec((1, C), const)],
        out_specs=pl.BlockSpec((1, tm, C), main_idx),
        compiler_params=_cparams(2),
    )(x1, x1, x1, g.reshape(1, C), b.reshape(1, C), d1_w, d1_b.reshape(1, Cm),
      dw_w, dw_b.reshape(1, Cm), d2_w, d2_b.reshape(1, C))


# ----------------------------- layer wrapper --------------------------------

def prepare_params(params, num_heads):
    """One-time (per-model) weight-side folding: softmax scale into q_w/q_b and
    the K/V weight concat.  Hoisted out of the per-forward path."""
    C = params["q_w"].shape[0]
    D = C // num_heads
    scale = 1.0 / math.sqrt(D)
    p = dict(params)
    p["q_w"] = params["q_w"] * scale
    p["q_b"] = params["q_b"] * scale
    p["kv_w"] = jnp.concatenate([params["k_w"], params["v_w"]], axis=1)
    p["kv_b"] = jnp.concatenate([params["k_b"], params["v_b"]], axis=0)
    return p


def segformer_layer(x, params, H, W, sr_ratio, num_heads):
    """Forward of SegformerLayer. x: (B, seq=H*W, C) float32.
    `params` must come from prepare_params()."""
    B, S, C = x.shape
    x2d = x.reshape(B * S, C)

    # --- LN1 + Q projection (+ fused K/V when sr_ratio == 1) ---
    if sr_ratio == 1:
        q2d, kv2d = ln1_qkv(x2d, params["ln1_g"], params["ln1_b"],
                            params["q_w"], params["q_b"],
                            params["kv_w"], params["kv_b"])
        Sr = S
    else:
        ln1_2d, q2d = ln1_q(x2d, params["ln1_g"], params["ln1_b"],
                            params["q_w"], params["q_b"])
        sr = sr_ratio
        # Conv2d(C, C, kernel=stride=sr) == non-overlapping patchify + matmul.
        # TODO(synk): move this patch gather into the SR kernel (strided
        # in-kernel loads) to remove one extra HBM pass over ln1.
        xr = ln1_2d.reshape(B, H // sr, sr, W // sr, sr, C)
        xr = xr.transpose(0, 1, 3, 2, 4, 5).reshape(B, -1, sr * sr * C)
        Sr = xr.shape[1]
        kv2d = sr_ln_kv(xr.reshape(B * Sr, sr * sr * C),
                        params["sr_w"], params["sr_b"],
                        params["srln_g"], params["srln_b"],
                        params["kv_w"], params["kv_b"])
    q = q2d.reshape(B, S, C)
    kv = kv2d.reshape(B, Sr, 2 * C)

    # --- attention + output projection + first residual ---
    x1 = attention_block(q, kv, params["o_w"], params["o_b"], x,
                         num_heads=num_heads)

    # --- LN2 + dense1 + depthwise 3x3 + GELU + dense2 + second residual ---
    return mixffn_block(x1, params["ln2_g"], params["ln2_b"],
                        params["d1_w"], params["d1_b"],
                        params["dw_w"], params["dw_b"],
                        params["d2_w"], params["d2_b"], H, W)


# ----------------------------- pure-JAX reference ---------------------------

def reference(x, params, H, W, sr_ratio, num_heads):
    B, S, C = x.shape
    D = C // num_heads

    def ln(y, g, b):
        m = y.mean(-1, keepdims=True)
        v = ((y - m) ** 2).mean(-1, keepdims=True)
        return (y - m) / jnp.sqrt(v + EPS) * g + b

    def lin(y, w, b):
        return y @ w + b

    ln1 = ln(x, params["ln1_g"], params["ln1_b"])
    q = lin(ln1, params["q_w"], params["q_b"])
    if sr_ratio > 1:
        sr = sr_ratio
        xr = ln1.reshape(B, H, W, C).reshape(B, H // sr, sr, W // sr, sr, C)
        xr = xr.transpose(0, 1, 3, 2, 4, 5).reshape(B, -1, sr * sr * C)
        kv_in = ln(lin(xr, params["sr_w"], params["sr_b"]),
                   params["srln_g"], params["srln_b"])
    else:
        kv_in = ln1
    k = lin(kv_in, params["k_w"], params["k_b"])
    v = lin(kv_in, params["v_w"], params["v_b"])
    Sr = k.shape[1]
    qh = q.reshape(B, S, num_heads, D).transpose(0, 2, 1, 3)
    kh = k.reshape(B, Sr, num_heads, D).transpose(0, 2, 1, 3)
    vh = v.reshape(B, Sr, num_heads, D).transpose(0, 2, 1, 3)
    s = jnp.einsum("bhqd,bhkd->bhqk", qh, kh) / jnp.sqrt(jnp.float32(D))
    p = jax.nn.softmax(s, axis=-1)
    ctx = jnp.einsum("bhqk,bhkd->bhqd", p, vh).transpose(0, 2, 1, 3).reshape(B, S, C)
    x1 = lin(ctx, params["o_w"], params["o_b"]) + x
    ln2 = ln(x1, params["ln2_g"], params["ln2_b"])
    h1 = lin(ln2, params["d1_w"], params["d1_b"])
    Cm = h1.shape[-1]
    img = h1.reshape(B, H, W, Cm)
    pad = jnp.pad(img, ((0, 0), (1, 1), (1, 1), (0, 0)))
    acc = jnp.zeros_like(img)
    for dy in range(3):
        for dx in range(3):
            acc = acc + pad[:, dy:dy + H, dx:dx + W, :] * params["dw_w"][dy, dx]
    acc = acc + params["dw_b"]
    h2 = jax.nn.gelu(acc, approximate=False).reshape(B, S, Cm)
    return lin(h2, params["d2_w"], params["d2_b"]) + x1


# ----------------------------- main -----------------------------------------

if __name__ == "__main__":
    B, H, W = 2, 8, 8
    C, num_heads, sr_ratio, mlp_ratio = 32, 2, 2, 4
    S = H * W
    Cm = int(C * mlp_ratio)

    keys = jax.random.split(jax.random.PRNGKey(0), 24)

    def mk(i, shape, scale=0.02):
        return scale * jax.random.normal(keys[i], shape, jnp.float32)

    params = dict(
        ln1_g=1.0 + 0.1 * jax.random.normal(keys[0], (C,), jnp.float32),
        ln1_b=0.1 * jax.random.normal(keys[1], (C,), jnp.float32),
        q_w=mk(2, (C, C)), q_b=mk(3, (C,)),
        k_w=mk(4, (C, C)), k_b=mk(5, (C,)),
        v_w=mk(6, (C, C)), v_b=mk(7, (C,)),
        sr_w=mk(8, (sr_ratio * sr_ratio * C, C)), sr_b=mk(9, (C,)),
        srln_g=1.0 + 0.1 * jax.random.normal(keys[10], (C,), jnp.float32),
        srln_b=0.1 * jax.random.normal(keys[11], (C,), jnp.float32),
        o_w=mk(12, (C, C)), o_b=mk(13, (C,)),
        ln2_g=1.0 + 0.1 * jax.random.normal(keys[14], (C,), jnp.float32),
        ln2_b=0.1 * jax.random.normal(keys[15], (C,), jnp.float32),
        d1_w=mk(16, (C, Cm)), d1_b=mk(17, (Cm,)),
        dw_w=mk(18, (3, 3, Cm), 0.1), dw_b=mk(19, (Cm,)),
        d2_w=mk(20, (Cm, C)), d2_b=mk(21, (C,)),
    )

    x = jax.random.normal(keys[22], (B, S, C), jnp.float32)

    prepared = prepare_params(params, num_heads)   # one-time weight-side folding

    for sr in (sr_ratio, 1):                       # exercise both SR paths
        out = segformer_layer(x, prepared, H, W, sr, num_heads)
        out = jax.block_until_ready(out)
        ref = reference(x, params, H, W, sr, num_heads)
        assert out.shape == (B, S, C)
        max_err = float(jnp.max(jnp.abs(out - ref)))
        assert jnp.allclose(out, ref, rtol=1e-3, atol=1e-3), (sr, max_err)

    print("KERNEL_OK")
</pallas_src>

<mosaic_0001>
module attributes {stable_mosaic.version = 11 : i64} {
  func.func @_ln1_q_kernel(%arg0: i32, %arg1: memref<128x32xf32, #tpu.memory_space<vmem>>, %arg2: memref<1x32xf32, #tpu.memory_space<vmem>>, %arg3: memref<1x32xf32, #tpu.memory_space<vmem>>, %arg4: memref<32x32xf32, #tpu.memory_space<vmem>>, %arg5: memref<1x32xf32, #tpu.memory_space<vmem>>, %arg6: memref<128x32xf32, #tpu.memory_space<vmem>>, %arg7: memref<128x32xf32, #tpu.memory_space<vmem>>) attributes {dimension_semantics = [#tpu.dimension_semantics<parallel>], iteration_bounds = array<i64: 1>, scalar_prefetch = 0 : i64, scratch_operands = 0 : i64, tpu.core_type = #tpu.core_type<tc>, window_params = [{transform_indices = @transform_0, window_bounds = array<i64: 128, 32>}, {pipeline_mode = #tpu.pipeline_mode<synchronous>, transform_indices = @transform_1, window_bounds = array<i64: 1, 32>}, {pipeline_mode = #tpu.pipeline_mode<synchronous>, transform_indices = @transform_2, window_bounds = array<i64: 1, 32>}, {pipeline_mode = #tpu.pipeline_mode<synchronous>, transform_indices = @transform_3, window_bounds = array<i64: 32, 32>}, {pipeline_mode = #tpu.pipeline_mode<synchronous>, transform_indices = @transform_4, window_bounds = array<i64: 1, 32>}, {transform_indices = @transform_5, window_bounds = array<i64: 128, 32>}, {transform_indices = @transform_6, window_bounds = array<i64: 128, 32>}]} {
    %c0 = arith.constant 0 : index
    %c0_0 = arith.constant 0 : index
    %0 = vector.load %arg1[%c0, %c0_0] : memref<128x32xf32, #tpu.memory_space<vmem>>, vector<128x32xf32>
    %c0_1 = arith.constant 0 : index
    %c0_2 = arith.constant 0 : index
    %1 = vector.load %arg2[%c0_1, %c0_2] : memref<1x32xf32, #tpu.memory_space<vmem>>, vector<1x32xf32>
    %c0_3 = arith.constant 0 : index
    %c0_4 = arith.constant 0 : index
    %2 = vector.load %arg3[%c0_3, %c0_4] : memref<1x32xf32, #tpu.memory_space<vmem>>, vector<1x32xf32>
    %cst = arith.constant dense<0.000000e+00> : vector<128xf32>
    %3 = vector.multi_reduction <add>, %0, %cst [1] : vector<128x32xf32> to vector<128xf32>
    %4 = vector.shape_cast %3 : vector<128xf32> to vector<128x1xf32>
    %cst_5 = arith.constant 3.200000e+01 : f32
    %5 = vector.broadcast %cst_5 : f32 to vector<128x1xf32>
    %6 = arith.divf %4, %5 : vector<128x1xf32>
    %7 = vector.broadcast %6 : vector<128x1xf32> to vector<128x32xf32>
    %8 = arith.subf %0, %7 : vector<128x32xf32>
    %9 = arith.mulf %8, %8 : vector<128x32xf32>
    %cst_6 = arith.constant dense<0.000000e+00> : vector<128xf32>
    %10 = vector.multi_reduction <add>, %9, %cst_6 [1] : vector<128x32xf32> to vector<128xf32>
    %11 = vector.shape_cast %10 : vector<128xf32> to vector<128x1xf32>
    %cst_7 = arith.constant 3.200000e+01 : f32
    %12 = vector.broadcast %cst_7 : f32 to vector<128x1xf32>
    %13 = arith.divf %11, %12 : vector<128x1xf32>
    %14 = vector.broadcast %6 : vector<128x1xf32> to vector<128x32xf32>
    %15 = arith.subf %0, %14 : vector<128x32xf32>
    %cst_8 = arith.constant 9.99999974E-6 : f32
    %16 = vector.broadcast %cst_8 : f32 to vector<128x1xf32>
    %17 = arith.addf %13, %16 : vector<128x1xf32>
    %18 = math.rsqrt %17 : vector<128x1xf32>
    %19 = vector.broadcast %18 : vector<128x1xf32> to vector<128x32xf32>
    %20 = arith.mulf %15, %19 : vector<128x32xf32>
    %21 = vector.broadcast %1 : vector<1x32xf32> to vector<128x32xf32>
    %22 = arith.mulf %20, %21 : vector<128x32xf32>
    %23 = vector.broadcast %2 : vector<1x32xf32> to vector<128x32xf32>
    %24 = arith.addf %22, %23 : vector<128x32xf32>
    %c0_9 = arith.constant 0 : index
    %c0_10 = arith.constant 0 : index
    %25 = vector.load %arg4[%c0_9, %c0_10] : memref<32x32xf32, #tpu.memory_space<vmem>>, vector<32x32xf32>
    %cst_11 = arith.constant dense<0.000000e+00> : vector<128x32xf32>
    %26 = tpu.matmul %24, %25, %cst_11 {dimension_numbers = #tpu.dot_dimension_numbers<[1], [0], [0], [1], [0, 0, 1, 1], [], []>} : vector<128x32xf32>, vector<32x32xf32>, vector<128x32xf32> -> vector<128x32xf32>
    %c0_12 = arith.constant 0 : index
    %c0_13 = arith.constant 0 : index
    %27 = vector.load %arg5[%c0_12, %c0_13] : memref<1x32xf32, #tpu.memory_space<vmem>>, vector<1x32xf32>
    %28 = vector.broadcast %27 : vector<1x32xf32> to vector<128x32xf32>
    %29 = arith.addf %26, %28 : vector<128x32xf32>
    %c0_14 = arith.constant 0 : index
    %c0_15 = arith.constant 0 : index
    %30 = vector.load %arg6[%c0_14, %c0_15] : memref<128x32xf32, #tpu.memory_space<vmem>>, vector<128x32xf32>
    tpu.vector_store %arg6[%c0_14, %c0_15], %24 {strides = array<i32>} : memref<128x32xf32, #tpu.memory_space<vmem>>, vector<128x32xf32>,
    %c0_16 = arith.constant 0 : index
    %c0_17 = arith.constant 0 : index
    %31 = vector.load %arg7[%c0_16, %c0_17] : memref<128x32xf32, #tpu.memory_space<vmem>>, vector<128x32xf32>
    tpu.vector_store %arg7[%c0_16, %c0_17], %29 {strides = array<i32>} : memref<128x32xf32, #tpu.memory_space<vmem>>, vector<128x32xf32>,
    return
  }
  func.func @transform_0(%arg0: i32) -> (i32, i32) {
    %c0_i32 = arith.constant 0 : i32
    %c0_i32_0 = arith.constant 0 : i32
    return %arg0, %c0_i32 : i32, i32
  }
  func.func @transform_1(%arg0: i32) -> (i32, i32) {
    %c0_i32 = arith.constant 0 : i32
    %c0_i32_0 = arith.constant 0 : i32
    %c0_i32_1 = arith.constant 0 : i32
    return %c0_i32, %c0_i32_0 : i32, i32
  }
  func.func @transform_2(%arg0: i32) -> (i32, i32) {
    %c0_i32 = arith.constant 0 : i32
    %c0_i32_0 = arith.constant 0 : i32
    %c0_i32_1 = arith.constant 0 : i32
    return %c0_i32, %c0_i32_0 : i32, i32
  }
  func.func @transform_3(%arg0: i32) -> (i32, i32) {
    %c0_i32 = arith.constant 0 : i32
    %c0_i32_0 = arith.constant 0 : i32
    %c0_i32_1 = arith.constant 0 : i32
    return %c0_i32, %c0_i32_0 : i32, i32
  }
  func.func @transform_4(%arg0: i32) -> (i32, i32) {
    %c0_i32 = arith.constant 0 : i32
    %c0_i32_0 = arith.constant 0 : i32
    %c0_i32_1 = arith.constant 0 : i32
    return %c0_i32, %c0_i32_0 : i32, i32
  }
  func.func @transform_5(%arg0: i32) -> (i32, i32) {
    %c0_i32 = arith.constant 0 : i32
    %c0_i32_0 = arith.constant 0 : i32
    return %arg0, %c0_i32 : i32, i32
  }
  func.func @transform_6(%arg0: i32) -> (i32, i32) {
    %c0_i32 = arith.constant 0 : i32
    %c0_i32_0 = arith.constant 0 : i32
    return %arg0, %c0_i32 : i32, i32
  }
}

</mosaic_0001>

<llo_original>
// kernel: tpu_custom_call.1
$region0: #{tpu_custom_call.1}
  #allocation0 [shape = 'u32[]', space=smem, size = 0x4, offset = 0x4, fixed_abs, tag = 'smem constant byte address 0x4 - core index']
  #allocation1 [shape = 'u32[144,128]{1,0:T(1,128)}', space=vmem, size = 0x12000, scoped, tag = 'internal scratch']
  %s0 = inlined_call_operand.vmem [shape: f32[128,32], index: 0, kind: input, shape index: {}]
  %s1 = inlined_call_operand.vmem [shape: f32[1,32], index: 1, kind: input, shape index: {}]
  %s2 = inlined_call_operand.vmem [shape: f32[1,32], index: 2, kind: input, shape index: {}]
  %s3 = inlined_call_operand.vmem [shape: f32[32,32], index: 3, kind: input, shape index: {}]
  %s4 = inlined_call_operand.vmem [shape: f32[1,32], index: 4, kind: input, shape index: {}]
  %s5 = inlined_call_operand.vmem [shape: f32[128,32], index: 5, kind: output, shape index: {0}]
  %s6 = inlined_call_operand.vmem [shape: f32[128,32], index: 6, kind: output, shape index: {1}]
  %7 = xla_tuple %s5, %s6
  %s8 = sld [smem:[#allocation0]]
  $region38: #{tpu_custom_call.1} parent=0
    _
  %s10 = ssub.s32 1, %s8
  %s11 = scalar_select 0, %s10, %s8
  // Predicated region
  $region2: #{tpu_custom_call.1} parent=0 // pred_check
    _
  $region3: #{tpu_custom_call.1} parent=0 // pred_check_branch
    %13 = sbr.rel (0) target = $region5
  $region4: #{tpu_custom_call.1} parent=0 // pred_region
    _
  $region5: #{tpu_custom_call.1} parent=0 // pred_fallthru
    _
  // Predicated region
  $region6: #{tpu_custom_call.1} parent=0 // pred_check
    _
  $region7: #{tpu_custom_call.1} parent=0 // pred_check_branch
    %15 = sbr.rel (0) target = $region9
  $region8: #{tpu_custom_call.1} parent=0 // pred_region
    _
  $region9: #{tpu_custom_call.1} parent=0 // pred_fallthru
    _
  // Predicated region
  $region10: #{tpu_custom_call.1} parent=0 // pred_check
    _
  $region11: #{tpu_custom_call.1} parent=0 // pred_check_branch
    %17 = sbr.rel (0) target = $region13
  $region12: #{tpu_custom_call.1} parent=0 // pred_region
    _
  $region13: #{tpu_custom_call.1} parent=0 // pred_fallthru
    _
  // Predicated region
  $region14: #{tpu_custom_call.1} parent=0 // pred_check
    _
  $region15: #{tpu_custom_call.1} parent=0 // pred_check_branch
    %19 = sbr.rel (0) target = $region17
  $region16: #{tpu_custom_call.1} parent=0 // pred_region
    _
  $region17: #{tpu_custom_call.1} parent=0 // pred_fallthru
    _
  // Predicated region
  $region18: #{tpu_custom_call.1} parent=0 // pred_check
    _
  $region19: #{tpu_custom_call.1} parent=0 // pred_check_branch
    %21 = sbr.rel (0) target = $region21
  $region20: #{tpu_custom_call.1} parent=0 // pred_region
    _
  $region21: #{tpu_custom_call.1} parent=0 // pred_fallthru
    _
  %v22 = vld [vmem:[%s0] sm:$0xff]
  %v23 = vld [vmem:[%s0 + $0x8] sm:$0xff]
  %v24 = vld [vmem:[%s0 + $0x10] sm:$0xff]
  %v25 = vld [vmem:[%s0 + $0x18] sm:$0xff]
  %v26 = vld [vmem:[%s0 + $0x20] sm:$0xff]
  %v27 = vld [vmem:[%s0 + $0x28] sm:$0xff]
  %v28 = vld [vmem:[%s0 + $0x30] sm:$0xff]
  %v29 = vld [vmem:[%s0 + $0x38] sm:$0xff]
  %v30 = vld [vmem:[%s0 + $0x40] sm:$0xff]
  %v31 = vld [vmem:[%s0 + $0x48] sm:$0xff]
  %v32 = vld [vmem:[%s0 + $0x50] sm:$0xff]
  %v33 = vld [vmem:[%s0 + $0x58] sm:$0xff]
  %v34 = vld [vmem:[%s0 + $0x60] sm:$0xff]
  %v35 = vld [vmem:[%s0 + $0x68] sm:$0xff]
  %v36 = vld [vmem:[%s0 + $0x70] sm:$0xff]
  %v37 = vld [vmem:[%s0 + $0x78] sm:$0xff]
  %v38 = vld [vmem:[%s1] sm:$0x1]
  %v39 = vld [vmem:[%s2] sm:$0x1]
  %vm40 = vcmask 261120
  %v41 = vsel %vm40, %v22, 0.0
  %42 = vadd.xlane.f32.xlu0 %v41
  %v43 = vpop.xlane.xlu0 %42
  %v44 = vsel %vm40, %v23, 0.0
  %45 = vadd.xlane.f32.xlu0 %v44
  %v46 = vpop.xlane.xlu0 %45
  %v47 = vsel %vm40, %v24, 0.0
  %48 = vadd.xlane.f32.xlu0 %v47
  %v49 = vpop.xlane.xlu0 %48
  %v50 = vsel %vm40, %v25, 0.0
  %51 = vadd.xlane.f32.xlu0 %v50
  %v52 = vpop.xlane.xlu0 %51
  %v53 = vsel %vm40, %v26, 0.0
  %54 = vadd.xlane.f32.xlu0 %v53
  %v55 = vpop.xlane.xlu0 %54
  %v56 = vsel %vm40, %v27, 0.0
  %57 = vadd.xlane.f32.xlu0 %v56
  %v58 = vpop.xlane.xlu0 %57
  %v59 = vsel %vm40, %v28, 0.0
  %60 = vadd.xlane.f32.xlu0 %v59
  %v61 = vpop.xlane.xlu0 %60
  %v62 = vsel %vm40, %v29, 0.0
  %63 = vadd.xlane.f32.xlu0 %v62
  %v64 = vpop.xlane.xlu0 %63
  %v65 = vsel %vm40, %v30, 0.0
  %66 = vadd.xlane.f32.xlu0 %v65
  %v67 = vpop.xlane.xlu0 %66
  %v68 = vsel %vm40, %v31, 0.0
  %69 = vadd.xlane.f32.xlu0 %v68
  %v70 = vpop.xlane.xlu0 %69
  %v71 = vsel %vm40, %v32, 0.0
  %72 = vadd.xlane.f32.xlu0 %v71
  %v73 = vpop.xlane.xlu0 %72
  %v74 = vsel %vm40, %v33, 0.0
  %75 = vadd.xlane.f32.xlu0 %v74
  %v76 = vpop.xlane.xlu0 %75
  %v77 = vsel %vm40, %v34, 0.0
  %78 = vadd.xlane.f32.xlu0 %v77
  %v79 = vpop.xlane.xlu0 %78
  %v80 = vsel %vm40, %v35, 0.0
  %81 = vadd.xlane.f32.xlu0 %v80
  %v82 = vpop.xlane.xlu0 %81
  %v83 = vsel %vm40, %v36, 0.0
  %84 = vadd.xlane.f32.xlu0 %v83
  %v85 = vpop.xlane.xlu0 %84
  %v86 = vsel %vm40, %v37, 0.0
  %87 = vadd.xlane.f32.xlu0 %v86
  %v88 = vpop.xlane.xlu0 %87
  %v89 = vrcp.pop 32.0
  %v90 = vmul.f32 %v43, %v89
  %v91 = vmul.f32 %v46, %v89
  %v92 = vmul.f32 %v49, %v89
  %v93 = vmul.f32 %v52, %v89
  %v94 = vmul.f32 %v55, %v89
  %v95 = vmul.f32 %v58, %v89
  %v96 = vmul.f32 %v61, %v89
  %v97 = vmul.f32 %v64, %v89
  %v98 = vmul.f32 %v67, %v89
  %v99 = vmul.f32 %v70, %v89
  %v100 = vmul.f32 %v73, %v89
  %v101 = vmul.f32 %v76, %v89
  %v102 = vmul.f32 %v79, %v89
  %v103 = vmul.f32 %v82, %v89
  %v104 = vmul.f32 %v85, %v89
  %v105 = vmul.f32 %v88, %v89
  %v106 = vsub.f32 %v22, %v90
  %v107 = vsub.f32 %v23, %v91
  %v108 = vsub.f32 %v24, %v92
  %v109 = vsub.f32 %v25, %v93
  %v110 = vsub.f32 %v26, %v94
  %v111 = vsub.f32 %v27, %v95
  %v112 = vsub.f32 %v28, %v96
  %v113 = vsub.f32 %v29, %v97
  %v114 = vsub.f32 %v30, %v98
  %v115 = vsub.f32 %v31, %v99
  %v116 = vsub.f32 %v32, %v100
  %v117 = vsub.f32 %v33, %v101
  %v118 = vsub.f32 %v34, %v102
  %v119 = vsub.f32 %v35, %v103
  %v120 = vsub.f32 %v36, %v104
  %v121 = vsub.f32 %v37, %v105
  %v122 = vmul.f32 %v106, %v106
  %v123 = vmul.f32 %v107, %v107
  %v124 = vmul.f32 %v108, %v108
  %v125 = vmul.f32 %v109, %v109
  %v126 = vmul.f32 %v110, %v110
  %v127 = vmul.f32 %v111, %v111
  %v128 = vmul.f32 %v112, %v112
  %v129 = vmul.f32 %v113, %v113
  %v130 = vmul.f32 %v114, %v114
  %v131 = vmul.f32 %v115, %v115
  %v132 = vmul.f32 %v116, %v116
  %v133 = vmul.f32 %v117, %v117
  %v134 = vmul.f32 %v118, %v118
  %v135 = vmul.f32 %v119, %v119
  %v136 = vmul.f32 %v120, %v120
  %v137 = vmul.f32 %v121, %v121
  %v138 = vsel %vm40, %v122, 0.0
  %139 = vadd.xlane.f32.xlu0 %v138
  %v140 = vpop.xlane.xlu0 %139
  %v141 = vsel %vm40, %v123, 0.0
  %142 = vadd.xlane.f32.xlu0 %v141
  %v143 = vpop.xlane.xlu0 %142
  %v144 = vsel %vm40, %v124, 0.0
  %145 = vadd.xlane.f32.xlu0 %v144
  %v146 = vpop.xlane.xlu0 %145
  %v147 = vsel %vm40, %v125, 0.0
  %148 = vadd.xlane.f32.xlu0 %v147
  %v149 = vpop.xlane.xlu0 %148
  %v150 = vsel %vm40, %v126, 0.0
  %151 = vadd.xlane.f32.xlu0 %v150
  %v152 = vpop.xlane.xlu0 %151
  %v153 = vsel %vm40, %v127, 0.0
  %154 = vadd.xlane.f32.xlu0 %v153
  %v155 = vpop.xlane.xlu0 %154
  %v156 = vsel %vm40, %v128, 0.0
  %157 = vadd.xlane.f32.xlu0 %v156
  %v158 = vpop.xlane.xlu0 %157
  %v159 = vsel %vm40, %v129, 0.0
  %160 = vadd.xlane.f32.xlu0 %v159
  %v161 = vpop.xlane.xlu0 %160
  %v162 = vsel %vm40, %v130, 0.0
  %163 = vadd.xlane.f32.xlu0 %v162
  %v164 = vpop.xlane.xlu0 %163
  %v165 = vsel %vm40, %v131, 0.0
  %166 = vadd.xlane.f32.xlu0 %v165
  %v167 = vpop.xlane.xlu0 %166
  %v168 = vsel %vm40, %v132, 0.0
  %169 = vadd.xlane.f32.xlu0 %v168
  %v170 = vpop.xlane.xlu0 %169
  %v171 = vsel %vm40, %v133, 0.0
  %172 = vadd.xlane.f32.xlu0 %v171
  %v173 = vpop.xlane.xlu0 %172
  %v174 = vsel %vm40, %v134, 0.0
  %175 = vadd.xlane.f32.xlu0 %v174
  %v176 = vpop.xlane.xlu0 %175
  %v177 = vsel %vm40, %v135, 0.0
  %178 = vadd.xlane.f32.xlu0 %v177
  %v179 = vpop.xlane.xlu0 %178
  %v180 = vsel %vm40, %v136, 0.0
  %181 = vadd.xlane.f32.xlu0 %v180
  %v182 = vpop.xlane.xlu0 %181
  %v183 = vsel %vm40, %v137, 0.0
  %184 = vadd.xlane.f32.xlu0 %v183
  %v185 = vpop.xlane.xlu0 %184
  %v186 = vmul.f32 %v140, %v89
  %v187 = vmul.f32 %v143, %v89
  %v188 = vmul.f32 %v146, %v89
  %v189 = vmul.f32 %v149, %v89
  %v190 = vmul.f32 %v152, %v89
  %v191 = vmul.f32 %v155, %v89
  %v192 = vmul.f32 %v158, %v89
  %v193 = vmul.f32 %v161, %v89
  %v194 = vmul.f32 %v164, %v89
  %v195 = vmul.f32 %v167, %v89
  %v196 = vmul.f32 %v170, %v89
  %v197 = vmul.f32 %v173, %v89
  %v198 = vmul.f32 %v176, %v89
  %v199 = vmul.f32 %v179, %v89
  %v200 = vmul.f32 %v182, %v89
  %v201 = vmul.f32 %v185, %v89
  %v202 = vadd.f32 %v186, 1e-05
  %v203 = vadd.f32 %v187, 1e-05
  %v204 = vadd.f32 %v188, 1e-05
  %v205 = vadd.f32 %v189, 1e-05
  %v206 = vadd.f32 %v190, 1e-05
  %v207 = vadd.f32 %v191, 1e-05
  %v208 = vadd.f32 %v192, 1e-05
  %v209 = vadd.f32 %v193, 1e-05
  %v210 = vadd.f32 %v194, 1e-05
  %v211 = vadd.f32 %v195, 1e-05
  %v212 = vadd.f32 %v196, 1e-05
  %v213 = vadd.f32 %v197, 1e-05
  %v214 = vadd.f32 %v198, 1e-05
  %v215 = vadd.f32 %v199, 1e-05
  %v216 = vadd.f32 %v200, 1e-05
  %v217 = vadd.f32 %v201, 1e-05
  %v218 = vrsqrt.pop %v202
  %v219 = vrsqrt.pop %v203
  %v220 = vrsqrt.pop %v204
  %v221 = vrsqrt.pop %v205
  %v222 = vrsqrt.pop %v206
  %v223 = vrsqrt.pop %v207
  %v224 = vrsqrt.pop %v208
  %v225 = vrsqrt.pop %v209
  %v226 = vrsqrt.pop %v210
  %v227 = vrsqrt.pop %v211
  %v228 = vrsqrt.pop %v212
  %v229 = vrsqrt.pop %v213
  %v230 = vrsqrt.pop %v214
  %v231 = vrsqrt.pop %v215
  %v232 = vrsqrt.pop %v216
  %v233 = vrsqrt.pop %v217
  %v234 = vmul.f32 %v106, %v218
  %v235 = vmul.f32 %v107, %v219
  %v236 = vmul.f32 %v108, %v220
  %v237 = vmul.f32 %v109, %v221
  %v238 = vmul.f32 %v110, %v222
  %v239 = vmul.f32 %v111, %v223
  %v240 = vmul.f32 %v112, %v224
  %v241 = vmul.f32 %v113, %v225
  %v242 = vmul.f32 %v114, %v226
  %v243 = vmul.f32 %v115, %v227
  %v244 = vmul.f32 %v116, %v228
  %v245 = vmul.f32 %v117, %v229
  %v246 = vmul.f32 %v118, %v230
  %v247 = vmul.f32 %v119, %v231
  %v248 = vmul.f32 %v120, %v232
  %v249 = vmul.f32 %v121, %v233
  %v251 = vlaneseq
  %v252 = vshrl.u32 %v251, 7
  %v253 = vsub.s32 0, %v252
  %v254 = vrot.slane %v38, %v253
  %v256 = vmul.f32 %v234, %v254
  %v257 = vmul.f32 %v235, %v254
  %v258 = vmul.f32 %v236, %v254
  %v259 = vmul.f32 %v237, %v254
  %v260 = vmul.f32 %v238, %v254
  %v261 = vmul.f32 %v239, %v254
  %v262 = vmul.f32 %v240, %v254
  %v263 = vmul.f32 %v241, %v254
  %v264 = vmul.f32 %v242, %v254
  %v265 = vmul.f32 %v243, %v254
  %v266 = vmul.f32 %v244, %v254
  %v267 = vmul.f32 %v245, %v254
  %v268 = vmul.f32 %v246, %v254
  %v269 = vmul.f32 %v247, %v254
  %v270 = vmul.f32 %v248, %v254
  %v271 = vmul.f32 %v249, %v254
  %v273 = vlaneseq
  %v274 = vshrl.u32 %v273, 7
  %v275 = vsub.s32 0, %v274
  %v276 = vrot.slane %v39, %v275
  %v278 = vadd.f32 %v256, %v276
  %v279 = vadd.f32 %v257, %v276
  %v280 = vadd.f32 %v258, %v276
  %v281 = vadd.f32 %v259, %v276
  %v282 = vadd.f32 %v260, %v276
  %v283 = vadd.f32 %v261, %v276
  %v284 = vadd.f32 %v262, %v276
  %v285 = vadd.f32 %v263, %v276
  %v286 = vadd.f32 %v264, %v276
  %v287 = vadd.f32 %v265, %v276
  %v288 = vadd.f32 %v266, %v276
  %v289 = vadd.f32 %v267, %v276
  %v290 = vadd.f32 %v268, %v276
  %v291 = vadd.f32 %v269, %v276
  %v292 = vadd.f32 %v270, %v276
  %v293 = vadd.f32 %v271, %v276
  %v294 = vld [vmem:[%s3] sm:$0xff]
  %v295 = vld [vmem:[%s3 + $0x8] sm:$0xff]
  %v296 = vld [vmem:[%s3 + $0x10] sm:$0xff]
  %v297 = vld [vmem:[%s3 + $0x18] sm:$0xff]
  %v298 = vld [vmem:[%s4] sm:$0x1]
  %v300 = vlaneseq
  %v301 = vshrl.u32 %v300, 7
  %v302 = vsub.s32 0, %v301
  %v303 = vrot.slane %v298, %v302
  %v306 = vsel %vm40, %v278, 0
  %v309 = vsel %vm40, %v279, 0
  %v312 = vsel %vm40, %v280, 0
  %v315 = vsel %vm40, %v281, 0
  %v318 = vsel %vm40, %v282, 0
  %v321 = vsel %vm40, %v283, 0
  %v324 = vsel %vm40, %v284, 0
  %v327 = vsel %vm40, %v285, 0
  %v330 = vsel %vm40, %v286, 0
  %v333 = vsel %vm40, %v287, 0
  %v336 = vsel %vm40, %v288, 0
  %v339 = vsel %vm40, %v289, 0
  %v342 = vsel %vm40, %v290, 0
  %v345 = vsel %vm40, %v291, 0
  %v348 = vsel %vm40, %v292, 0
  %v351 = vsel %vm40, %v293, 0
  %353 = vmatprep.subr.mxu0 0.0
  %354 = vmatpush1.msra.mxu0 %v294
  %355 = vmatprep.subr.mxu0 0.0
  %356 = vmatpush1.msra.mxu0 %v295
  %357 = vmatprep.subr.mxu0 0.0
  %358 = vmatpush1.msra.mxu0 %v296
  %359 = vmatprep.subr.mxu0 0.0
  %360 = vmatpush1.msra.mxu0 %v297
  %361 = vmatprep.subr.mxu0 0.0
  %362 = vmatpush1.msra.mxu0 0.0
  %363 = vmatprep.subr.mxu0 0.0
  %364 = vmatpush1.msra.mxu0 0.0
  %365 = vmatprep.subr.mxu0 0.0
  %366 = vmatpush1.msra.mxu0 0.0
  %367 = vmatprep.subr.mxu0 0.0
  %368 = vmatpush1.msra.mxu0 0.0
  %369 = vmatprep.subr.mxu0 0.0
  %370 = vmatpush1.msra.mxu0 0.0
  %371 = vmatprep.subr.mxu0 0.0
  %372 = vmatpush1.msra.mxu0 0.0
  %373 = vmatprep.subr.mxu0 0.0
  %374 = vmatpush1.msra.mxu0 0.0
  %375 = vmatprep.subr.mxu0 0.0
  %376 = vmatpush1.msra.mxu0 0.0
  %377 = vmatprep.subr.mxu0 0.0
  %378 = vmatpush1.msra.mxu0 0.0
  %379 = vmatprep.subr.mxu0 0.0
  %380 = vmatpush1.msra.mxu0 0.0
  %381 = vmatprep.subr.mxu0 0.0
  %382 = vmatpush1.msra.mxu0 0.0
  %383 = vmatprep.subr.mxu0 0.0
  %384 = vmatpush1.msra.mxu0 0.0
  %385 = vmatprep.subr.mxu0 0.0
  %386 = vmatpush1.msra.mxu0 0.0
  %387 = vmatprep.subr.mxu0 0.0
  %388 = vmatpush1.msra.mxu0 0.0
  %389 = vmatprep.subr.mxu0 0.0
  %390 = vmatpush1.msra.mxu0 0.0
  %391 = vmatprep.subr.mxu0 0.0
  %392 = vmatpush1.msra.mxu0 0.0
  %393 = vmatprep.subr.mxu0 0.0
  %394 = vmatpush1.msra.mxu0 0.0
  %395 = vmatprep.subr.mxu0 0.0
  %396 = vmatpush1.msra.mxu0 0.0
  %397 = vmatprep.subr.mxu0 0.0
  %398 = vmatpush1.msra.mxu0 0.0
  %399 = vmatprep.subr.mxu0 0.0
  %400 = vmatpush1.msra.mxu0 0.0
  %401 = vmatprep.subr.mxu0 0.0
  %402 = vmatpush1.msra.mxu0 0.0
  %403 = vmatprep.subr.mxu0 0.0
  %404 = vmatpush1.msra.mxu0 0.0
  %405 = vmatprep.subr.mxu0 0.0
  %406 = vmatpush1.msra.mxu0 0.0
  %407 = vmatprep.subr.mxu0 0.0
  %408 = vmatpush1.msra.mxu0 0.0
  %409 = vmatprep.subr.mxu0 0.0
  %410 = vmatpush1.msra.mxu0 0.0
  %411 = vmatprep.subr.mxu0 0.0
  %412 = vmatpush1.msra.mxu0 0.0
  %413 = vmatprep.subr.mxu0 0.0
  %414 = vmatpush1.msra.mxu0 0.0
  %415 = vmatprep.subr.mxu0 0.0
  %416 = vmatpush1.msra.mxu0 0.0
  %417 = vmatprep.mubr.f32.mxu0 0.0
  %418 = vmatmul.mubr.f32.gmra.mrb[0].mxu0 %v306
  %v419 = vpop.f32.mrb[0].mxu0
  %v420 = vadd.f32 %v303, %v419
  %v421 = vpop.f32.mrb[0].mxu0
  %422 = vmatprep.mubr.f32.mxu0 0.0
  %423 = vmatmul.mubr.f32.gmra.mrb[0].mxu0 %v309
  %v424 = vpop.f32.mrb[0].mxu0
  %v425 = vadd.f32 %v303, %v424
  %v426 = vpop.f32.mrb[0].mxu0
  %427 = vmatprep.mubr.f32.mxu0 0.0
  %428 = vmatmul.mubr.f32.gmra.mrb[0].mxu0 %v312
  %v429 = vpop.f32.mrb[0].mxu0
  %v430 = vadd.f32 %v303, %v429
  %v431 = vpop.f32.mrb[0].mxu0
  %432 = vmatprep.mubr.f32.mxu0 0.0
  %433 = vmatmul.mubr.f32.gmra.mrb[0].mxu0 %v315
  %v434 = vpop.f32.mrb[0].mxu0
  %v435 = vadd.f32 %v303, %v434
  %v436 = vpop.f32.mrb[0].mxu0
  %437 = vmatprep.mubr.f32.mxu0 0.0
  %438 = vmatmul.mubr.f32.gmra.mrb[0].mxu0 %v318
  %v439 = vpop.f32.mrb[0].mxu0
  %v440 = vadd.f32 %v303, %v439
  %v441 = vpop.f32.mrb[0].mxu0
  %442 = vmatprep.mubr.f32.mxu0 0.0
  %443 = vmatmul.mubr.f32.gmra.mrb[0].mxu0 %v321
  %v444 = vpop.f32.mrb[0].mxu0
  %v445 = vadd.f32 %v303, %v444
  %v446 = vpop.f32.mrb[0].mxu0
  %447 = vmatprep.mubr.f32.mxu0 0.0
  %448 = vmatmul.mubr.f32.gmra.mrb[0].mxu0 %v324
  %v449 = vpop.f32.mrb[0].mxu0
  %v450 = vadd.f32 %v303, %v449
  %v451 = vpop.f32.mrb[0].mxu0
  %452 = vmatprep.mubr.f32.mxu0 0.0
  %453 = vmatmul.mubr.f32.gmra.mrb[0].mxu0 %v327
  %v454 = vpop.f32.mrb[0].mxu0
  %v455 = vadd.f32 %v303, %v454
  %v456 = vpop.f32.mrb[0].mxu0
  %457 = vmatprep.mubr.f32.mxu0 0.0
  %458 = vmatmul.mubr.f32.gmra.mrb[0].mxu0 %v330
  %v459 = vpop.f32.mrb[0].mxu0
  %v460 = vadd.f32 %v303, %v459
  %v461 = vpop.f32.mrb[0].mxu0
  %462 = vmatprep.mubr.f32.mxu0 0.0
  %463 = vmatmul.mubr.f32.gmra.mrb[0].mxu0 %v333
  %v464 = vpop.f32.mrb[0].mxu0
  %v465 = vadd.f32 %v303, %v464
  %v466 = vpop.f32.mrb[0].mxu0
  %467 = vmatprep.mubr.f32.mxu0 0.0
  %468 = vmatmul.mubr.f32.gmra.mrb[0].mxu0 %v336
  %v469 = vpop.f32.mrb[0].mxu0
  %v470 = vadd.f32 %v303, %v469
  %v471 = vpop.f32.mrb[0].mxu0
  %472 = vmatprep.mubr.f32.mxu0 0.0
  %473 = vmatmul.mubr.f32.gmra.mrb[0].mxu0 %v339
  %v474 = vpop.f32.mrb[0].mxu0
  %v475 = vadd.f32 %v303, %v474
  %v476 = vpop.f32.mrb[0].mxu0
  %477 = vmatprep.mubr.f32.mxu0 0.0
  %478 = vmatmul.mubr.f32.gmra.mrb[0].mxu0 %v342
  %v479 = vpop.f32.mrb[0].mxu0
  %v480 = vadd.f32 %v303, %v479
  %v481 = vpop.f32.mrb[0].mxu0
  %482 = vmatprep.mubr.f32.mxu0 0.0
  %483 = vmatmul.mubr.f32.gmra.mrb[0].mxu0 %v345
  %v484 = vpop.f32.mrb[0].mxu0
  %v485 = vadd.f32 %v303, %v484
  %v486 = vpop.f32.mrb[0].mxu0
  %487 = vmatprep.mubr.f32.mxu0 0.0
  %488 = vmatmul.mubr.f32.gmra.mrb[0].mxu0 %v348
  %v489 = vpop.f32.mrb[0].mxu0
  %v490 = vadd.f32 %v303, %v489
  %v491 = vpop.f32.mrb[0].mxu0
  %492 = vmatprep.mubr.f32.mxu0 0.0
  %493 = vmatmul.mubr.f32.gmra.mrb[0].mxu0 %v351
  %v494 = vpop.f32.mrb[0].mxu0
  %v495 = vadd.f32 %v303, %v494
  %v496 = vpop.f32.mrb[0].mxu0
  %497 = vdwg.mxu0
  %498 = vst.msk [vmem:[%s5] sm:$0xff] %vm40, %v278
  %499 = vst.msk [vmem:[%s5 + $0x8] sm:$0xff] %vm40, %v279
  %500 = vst.msk [vmem:[%s5 + $0x10] sm:$0xff] %vm40, %v280
  %501 = vst.msk [vmem:[%s5 + $0x18] sm:$0xff] %vm40, %v281
  %502 = vst.msk [vmem:[%s5 + $0x20] sm:$0xff] %vm40, %v282
  %503 = vst.msk [vmem:[%s5 + $0x28] sm:$0xff] %vm40, %v283
  %504 = vst.msk [vmem:[%s5 + $0x30] sm:$0xff] %vm40, %v284
  %505 = vst.msk [vmem:[%s5 + $0x38] sm:$0xff] %vm40, %v285
  %506 = vst.msk [vmem:[%s5 + $0x40] sm:$0xff] %vm40, %v286
  %507 = vst.msk [vmem:[%s5 + $0x48] sm:$0xff] %vm40, %v287
  %508 = vst.msk [vmem:[%s5 + $0x50] sm:$0xff] %vm40, %v288
  %509 = vst.msk [vmem:[%s5 + $0x58] sm:$0xff] %vm40, %v289
  %510 = vst.msk [vmem:[%s5 + $0x60] sm:$0xff] %vm40, %v290
  %511 = vst.msk [vmem:[%s5 + $0x68] sm:$0xff] %vm40, %v291
  %512 = vst.msk [vmem:[%s5 + $0x70] sm:$0xff] %vm40, %v292
  %513 = vst.msk [vmem:[%s5 + $0x78] sm:$0xff] %vm40, %v293
  %514 = vst.msk [vmem:[%s6] sm:$0xff] %vm40, %v420
  %515 = vst.msk [vmem:[%s6 + $0x8] sm:$0xff] %vm40, %v425
  %516 = vst.msk [vmem:[%s6 + $0x10] sm:$0xff] %vm40, %v430
  %517 = vst.msk [vmem:[%s6 + $0x18] sm:$0xff] %vm40, %v435
  %518 = vst.msk [vmem:[%s6 + $0x20] sm:$0xff] %vm40, %v440
  %519 = vst.msk [vmem:[%s6 + $0x28] sm:$0xff] %vm40, %v445
  %520 = vst.msk [vmem:[%s6 + $0x30] sm:$0xff] %vm40, %v450
  %521 = vst.msk [vmem:[%s6 + $0x38] sm:$0xff] %vm40, %v455
  %522 = vst.msk [vmem:[%s6 + $0x40] sm:$0xff] %vm40, %v460
  %523 = vst.msk [vmem:[%s6 + $0x48] sm:$0xff] %vm40, %v465
  %524 = vst.msk [vmem:[%s6 + $0x50] sm:$0xff] %vm40, %v470
  %525 = vst.msk [vmem:[%s6 + $0x58] sm:$0xff] %vm40, %v475
  %526 = vst.msk [vmem:[%s6 + $0x60] sm:$0xff] %vm40, %v480
  %527 = vst.msk [vmem:[%s6 + $0x68] sm:$0xff] %vm40, %v485
  %528 = vst.msk [vmem:[%s6 + $0x70] sm:$0xff] %vm40, %v490
  %529 = vst.msk [vmem:[%s6 + $0x78] sm:$0xff] %vm40, %v495
  // Predicated region
  $region22: #{tpu_custom_call.1} parent=0 // pred_check
    _
  $region23: #{tpu_custom_call.1} parent=0 // pred_check_branch
    %531 = sbr.rel (0) target = $region25
  $region24: #{tpu_custom_call.1} parent=0 // pred_region
    _
  $region25: #{tpu_custom_call.1} parent=0 // pred_fallthru
    _
  // Predicated region
  $region26: #{tpu_custom_call.1} parent=0 // pred_check
    _
  $region27: #{tpu_custom_call.1} parent=0 // pred_check_branch
    %533 = sbr.rel (0) target = $region29
  $region28: #{tpu_custom_call.1} parent=0 // pred_region
    _
  $region29: #{tpu_custom_call.1} parent=0 // pred_fallthru
    _
  // Predicated region
  $region30: #{tpu_custom_call.1} parent=0 // pred_check
    _
  $region31: #{tpu_custom_call.1} parent=0 // pred_check_branch
    %535 = sbr.rel (0) target = $region33
  $region32: #{tpu_custom_call.1} parent=0 // pred_region
    _
  $region33: #{tpu_custom_call.1} parent=0 // pred_fallthru
    _
  // Predicated region
  $region34: #{tpu_custom_call.1} parent=0 // pred_check
    _
  $region35: #{tpu_custom_call.1} parent=0 // pred_check_branch
    %537 = sbr.rel (0) target = $region37
  $region36: #{tpu_custom_call.1} parent=0 // pred_region
    _
  $region37: #{tpu_custom_call.1} parent=0 // pred_fallthru
    _

</llo_original>
